<compile_context>
chip_gen: v6e
topology: v6e:2x2x1
jax: 0.10.0
libtpu: 0.0.40
codegen_flags: <defaults>
</compile_context>

<pallas_src>
import jax
import jax.numpy as jnp
from jax import lax
from jax.experimental import pallas as pl
from jax.experimental.pallas import tpu as pltpu

EPS = 1e-6

# Per-grid-step VMEM budget (covers double-buffered input tiles + worst-case
# in-kernel f32 temporaries). Safe on v7x (64 MiB physical VMEM) and leaves
# headroom under the 48 MiB scoped limit below on all generations.
_PER_STEP_VMEM_BUDGET = 32 * 1024 * 1024
_VMEM_LIMIT_BYTES = 48 * 1024 * 1024  # essential on v5e (16 MiB default limit)


def _round_up(x, m):
    return ((x + m - 1) // m) * m


def _round_down(x, m):
    return (x // m) * m


def _make_kernel(kt, hw_tile, hw_total, mask_tail):
    """Builds the streaming-reduction kernel for a fixed static tiling."""

    def kernel(yp_ref, yt_ref, tp_ref, sp_ref, sg_ref):
        k = pl.program_id(2)  # spatial (reduction) axis — "arbitrary"

        @pl.when(k == 0)
        def _init():
            tp_ref[...] = jnp.zeros_like(tp_ref)
            sp_ref[...] = jnp.zeros_like(sp_ref)
            sg_ref[...] = jnp.zeros_like(sg_ref)

        # Stream at native width; cast to f32 in-kernel (free against the DMA).
        p0 = yp_ref[...].astype(jnp.float32)
        g0 = yt_ref[...].astype(jnp.float32)

        if mask_tail:
            # cdiv grid: the last (possibly duplicated/partial) block holds
            # garbage columns beyond H*W — zero them (zero is sum-safe).
            s = pl.program_id(0)
            col0 = (s * kt + k) * hw_tile
            col = col0 + lax.broadcasted_iota(jnp.int32, p0.shape, 1)
            valid = col < hw_total
            p0 = jnp.where(valid, p0, 0.0)
            g0 = jnp.where(valid, g0, 0.0)

        tp_ref[...] += jnp.sum(p0 * g0, axis=-1, keepdims=True)[None]
        sp_ref[...] += jnp.sum(p0, axis=-1, keepdims=True)[None]
        sg_ref[...] += jnp.sum(g0, axis=-1, keepdims=True)[None]

    return kernel


def tversky_coef_loss(y_pred, y_true, alpha, beta):
    assert y_pred.shape == y_true.shape, "predict & target shape do not match"
    N, C, H, W = y_pred.shape
    NC, HW = N * C, H * W

    # Free metadata reshape; no wrapper-side upcast (cast happens in-kernel).
    yp = y_pred.reshape(NC, HW)
    yt = y_true.reshape(NC, HW)

    ip = jnp.dtype(yp.dtype).itemsize
    ig = jnp.dtype(yt.dtype).itemsize

    # Sublane quantum of the most tightly packed input dtype (8 f32, 16 bf16, ...).
    nc_quantum = max(8, 32 // max(1, min(ip, ig)))

    # ---- megacore strategy -------------------------------------------------
    # If NC can give >= 2 parallel blocks, the NC axis shards across the two
    # v7x TensorCores. Otherwise split the HW reduction into 2 independent
    # halves (each writes its own partials, summed in the epilogue).
    nc_parallel = NC >= 2 * nc_quantum
    n_split = 1 if (nc_parallel or HW < 2 * 128) else 2

    # ---- per-step VMEM charge (conservative, per element pair) --------------
    #   2 double-buffered copies of each input tile            : 2*(ip+ig)
    #   worst-case f32 temporaries (p cast, g cast, product)   : 12
    #   tail-mask / select temporaries                         : 8
    charge = 2 * (ip + ig) + 20
    elems_budget = max(8 * 128, _PER_STEP_VMEM_BUDGET // charge)

    # ---- NC (sublane) tile lower bound --------------------------------------
    nc_min = nc_quantum if nc_parallel else NC  # full extent is always legal

    # ---- HW (lane / reduction) tile ------------------------------------------
    max_hw = max(128, _round_down(elems_budget // nc_min, 128))
    if n_split == 1 and HW <= max_hw:
        hw_tile = HW  # full extent: single reduction step, no tail
        kt = 1
    else:
        kt_total = max(n_split, pl.cdiv(HW, max_hw))
        hw_tile = min(max_hw, _round_up(pl.cdiv(HW, kt_total), 128))
        kt = pl.cdiv(pl.cdiv(HW, hw_tile), n_split)  # reduction steps per split
    hw_blocks = pl.cdiv(HW, hw_tile)
    mask_tail = (n_split * kt * hw_tile) != HW

    # ---- grow the NC tile to fill the per-step budget (adaptive) -------------
    if nc_parallel:
        cap_parallel = max(nc_quantum, _round_down(NC // 2, nc_quantum))  # >=2 blocks
        fit = max(nc_quantum, _round_down(elems_budget // hw_tile, nc_quantum))
        nc_tile = min(cap_parallel, fit)
    else:
        nc_tile = NC
    nc_blocks = pl.cdiv(NC, nc_tile)

    grid = (n_split, nc_blocks, kt)

    def in_map(s, i, k):
        # Clamp so a padded last step of the second split re-reads an existing
        # block (its columns are fully masked in-kernel) instead of going OOB.
        t = jnp.minimum(s * kt + k, hw_blocks - 1)
        return (i, t)

    def out_map(s, i, k):
        return (s, i, 0)

    part = jax.ShapeDtypeStruct((n_split, NC, 1), jnp.float32)
    out_spec = pl.BlockSpec((1, nc_tile, 1), out_map)

    kernel = _make_kernel(kt, hw_tile, HW, mask_tail)

    tp, sp, sg = pl.pallas_call(
        kernel,
        out_shape=(part, part, part),
        grid_spec=pltpu.PrefetchScalarGridSpec(
            num_scalar_prefetch=0,
            grid=grid,
            in_specs=[
                pl.BlockSpec((nc_tile, hw_tile), in_map),  # y_pred
                pl.BlockSpec((nc_tile, hw_tile), in_map),  # y_true
            ],
            out_specs=(out_spec, out_spec, out_spec),
        ),
        compiler_params=pltpu.CompilerParams(
            dimension_semantics=("parallel", "parallel", "arbitrary"),
            vmem_limit_bytes=_VMEM_LIMIT_BYTES,
        ),
    )(yp, yt)

    # ---- tiny O(N*C) epilogue in plain JAX -----------------------------------
    tp = jnp.sum(tp, axis=0).reshape(N, C)
    sp = jnp.sum(sp, axis=0).reshape(N, C)
    sg = jnp.sum(sg, axis=0).reshape(N, C)
    fp = sp - tp
    fn = sg - tp
    a = jnp.asarray(alpha, jnp.float32)[None, :]
    b = jnp.asarray(beta, jnp.float32)[None, :]
    den = tp + a * fp + b * fn
    T = tp / (den + EPS)
    return 1.0 - jnp.mean(T)


def _reference(y_pred, y_true, alpha, beta):
    p0 = y_pred.astype(jnp.float32)
    g0 = y_true.astype(jnp.float32)
    p1 = 1.0 - p0
    g1 = 1.0 - g0
    fn = jnp.sum(p1 * g0, axis=(2, 3))
    fp = jnp.sum(p0 * g1, axis=(2, 3))
    tp = jnp.sum(p0 * g0, axis=(2, 3))
    a = jnp.asarray(alpha, jnp.float32)[None, :]
    b = jnp.asarray(beta, jnp.float32)[None, :]
    den = tp + a * fp + b * fn
    T = tp / (den + EPS)
    return 1.0 - jnp.mean(T)


if __name__ == "__main__":
    key = jax.random.PRNGKey(0)

    def make(k, shape, dtype=jnp.float32):
        k1, k2 = jax.random.split(k)
        yp = jax.nn.sigmoid(jax.random.normal(k1, shape, jnp.float32)).astype(dtype)
        yt = (jax.random.uniform(k2, shape) > 0.5).astype(dtype)
        return yp, yt

    alpha4 = [0.3, 0.5, 0.7, 0.4]
    beta4 = [0.7, 0.5, 0.3, 0.6]

    # Case 1: (2,4,16,16) f32 — small NC, exercises the HW-split (n_split=2) path.
    key, sub = jax.random.split(key)
    yp1, yt1 = make(sub, (2, 4, 16, 16))
    out = jax.block_until_ready(tversky_coef_loss(yp1, yt1, alpha4, beta4))
    ref = _reference(yp1, yt1, alpha4, beta4)
    assert jnp.allclose(out, ref, atol=1e-5, rtol=1e-5), (out, ref)

    # Case 2: bf16 inputs, same shape (no wrapper-side upcast, in-kernel cast).
    yp2, yt2 = yp1.astype(jnp.bfloat16), yt1.astype(jnp.bfloat16)
    out = jax.block_until_ready(tversky_coef_loss(yp2, yt2, alpha4, beta4))
    ref = _reference(yp2, yt2, alpha4, beta4)
    assert jnp.allclose(out, ref, atol=1e-4, rtol=1e-4), (out, ref)

    # Case 3: H*W = 324 (not a multiple of the lane tile) — exercises the
    # cdiv grid + broadcasted_iota tail mask.
    key, sub = jax.random.split(key)
    yp3, yt3 = make(sub, (2, 4, 18, 18))
    out = jax.block_until_ready(tversky_coef_loss(yp3, yt3, alpha4, beta4))
    ref = _reference(yp3, yt3, alpha4, beta4)
    assert jnp.allclose(out, ref, atol=1e-5, rtol=1e-5), (out, ref)

    # Case 4: larger N*C — exercises the NC-parallel branch (n_split=1,
    # adaptive nc_tile, >= 2 parallel NC blocks).
    key, sub = jax.random.split(key)
    alpha8 = [0.3, 0.5, 0.7, 0.4, 0.6, 0.2, 0.5, 0.5]
    beta8 = [0.7, 0.5, 0.3, 0.6, 0.4, 0.8, 0.5, 0.5]
    yp4, yt4 = make(sub, (4, 8, 16, 16))
    out = jax.block_until_ready(tversky_coef_loss(yp4, yt4, alpha8, beta8))
    ref = _reference(yp4, yt4, alpha8, beta8)
    assert jnp.allclose(out, ref, atol=1e-5, rtol=1e-5), (out, ref)

    print("KERNEL_OK")
</pallas_src>

<mosaic_0001>
module attributes {stable_mosaic.version = 11 : i64} {
  func.func @kernel(%arg0: i32, %arg1: i32, %arg2: i32, %arg3: memref<8x128xf32, #tpu.memory_space<vmem>>, %arg4: memref<8x128xf32, #tpu.memory_space<vmem>>, %arg5: memref<1x8x1xf32, #tpu.memory_space<vmem>>, %arg6: memref<1x8x1xf32, #tpu.memory_space<vmem>>, %arg7: memref<1x8x1xf32, #tpu.memory_space<vmem>>) attributes {dimension_semantics = [#tpu.dimension_semantics<parallel>, #tpu.dimension_semantics<parallel>, #tpu.dimension_semantics<arbitrary>], iteration_bounds = array<i64: 2, 1, 1>, scalar_prefetch = 0 : i64, scratch_operands = 0 : i64, tpu.core_type = #tpu.core_type<tc>, window_params = [{transform_indices = @transform_0, window_bounds = array<i64: 8, 128>}, {transform_indices = @transform_1, window_bounds = array<i64: 8, 128>}, {transform_indices = @transform_2, window_bounds = array<i64: 1, 8, 1>}, {transform_indices = @transform_3, window_bounds = array<i64: 1, 8, 1>}, {transform_indices = @transform_4, window_bounds = array<i64: 1, 8, 1>}]} {
    %c0_i32 = arith.constant 0 : i32
    %0 = arith.cmpi eq, %arg2, %c0_i32 : i32
    %1 = arith.extui %0 : i1 to i32
    %c0_i32_0 = arith.constant 0 : i32
    %2 = arith.cmpi ne, %1, %c0_i32_0 : i32
    scf.if %2 {
      %cst_24 = arith.constant 0.000000e+00 : f32
      %24 = vector.broadcast %cst_24 : f32 to vector<1x8x1xf32>
      %c0_25 = arith.constant 0 : index
      %c0_26 = arith.constant 0 : index
      %c0_27 = arith.constant 0 : index
      %25 = vector.load %arg5[%c0_25, %c0_26, %c0_27] : memref<1x8x1xf32, #tpu.memory_space<vmem>>, vector<1x8x1xf32>
      tpu.vector_store %arg5[%c0_25, %c0_26, %c0_27], %24 {strides = array<i32>} : memref<1x8x1xf32, #tpu.memory_space<vmem>>, vector<1x8x1xf32>,
      %cst_28 = arith.constant 0.000000e+00 : f32
      %26 = vector.broadcast %cst_28 : f32 to vector<1x8x1xf32>
      %c0_29 = arith.constant 0 : index
      %c0_30 = arith.constant 0 : index
      %c0_31 = arith.constant 0 : index
      %27 = vector.load %arg6[%c0_29, %c0_30, %c0_31] : memref<1x8x1xf32, #tpu.memory_space<vmem>>, vector<1x8x1xf32>
      tpu.vector_store %arg6[%c0_29, %c0_30, %c0_31], %26 {strides = array<i32>} : memref<1x8x1xf32, #tpu.memory_space<vmem>>, vector<1x8x1xf32>,
      %cst_32 = arith.constant 0.000000e+00 : f32
      %28 = vector.broadcast %cst_32 : f32 to vector<1x8x1xf32>
      %c0_33 = arith.constant 0 : index
      %c0_34 = arith.constant 0 : index
      %c0_35 = arith.constant 0 : index
      %29 = vector.load %arg7[%c0_33, %c0_34, %c0_35] : memref<1x8x1xf32, #tpu.memory_space<vmem>>, vector<1x8x1xf32>
      tpu.vector_store %arg7[%c0_33, %c0_34, %c0_35], %28 {strides = array<i32>} : memref<1x8x1xf32, #tpu.memory_space<vmem>>, vector<1x8x1xf32>,
    } else {
    }
    %c0 = arith.constant 0 : index
    %c0_1 = arith.constant 0 : index
    %3 = vector.load %arg3[%c0, %c0_1] : memref<8x128xf32, #tpu.memory_space<vmem>>, vector<8x128xf32>
    %c0_2 = arith.constant 0 : index
    %c0_3 = arith.constant 0 : index
    %4 = vector.load %arg4[%c0_2, %c0_3] : memref<8x128xf32, #tpu.memory_space<vmem>>, vector<8x128xf32>
    %c0_4 = arith.constant 0 : index
    %c0_5 = arith.constant 0 : index
    %c0_6 = arith.constant 0 : index
    %5 = vector.load %arg5[%c0_4, %c0_5, %c0_6] : memref<1x8x1xf32, #tpu.memory_space<vmem>>, vector<1x8x1xf32>
    %6 = arith.mulf %3, %4 : vector<8x128xf32>
    %cst = arith.constant dense<0.000000e+00> : vector<8xf32>
    %7 = vector.multi_reduction <add>, %6, %cst [1] : vector<8x128xf32> to vector<8xf32>
    %8 = vector.shape_cast %7 : vector<8xf32> to vector<8x1xf32>
    %9 = vector.shape_cast %8 : vector<8x1xf32> to vector<1x8x1xf32>
    %10 = arith.addf %5, %9 : vector<1x8x1xf32>
    %c0_7 = arith.constant 0 : index
    %c0_8 = arith.constant 0 : index
    %c0_9 = arith.constant 0 : index
    %11 = vector.load %arg5[%c0_7, %c0_8, %c0_9] : memref<1x8x1xf32, #tpu.memory_space<vmem>>, vector<1x8x1xf32>
    tpu.vector_store %arg5[%c0_7, %c0_8, %c0_9], %10 {strides = array<i32>} : memref<1x8x1xf32, #tpu.memory_space<vmem>>, vector<1x8x1xf32>,
    %c0_10 = arith.constant 0 : index
    %c0_11 = arith.constant 0 : index
    %c0_12 = arith.constant 0 : index
    %12 = vector.load %arg6[%c0_10, %c0_11, %c0_12] : memref<1x8x1xf32, #tpu.memory_space<vmem>>, vector<1x8x1xf32>
    %cst_13 = arith.constant dense<0.000000e+00> : vector<8xf32>
    %13 = vector.multi_reduction <add>, %3, %cst_13 [1] : vector<8x128xf32> to vector<8xf32>
    %14 = vector.shape_cast %13 : vector<8xf32> to vector<8x1xf32>
    %15 = vector.shape_cast %14 : vector<8x1xf32> to vector<1x8x1xf32>
    %16 = arith.addf %12, %15 : vector<1x8x1xf32>
    %c0_14 = arith.constant 0 : index
    %c0_15 = arith.constant 0 : index
    %c0_16 = arith.constant 0 : index
    %17 = vector.load %arg6[%c0_14, %c0_15, %c0_16] : memref<1x8x1xf32, #tpu.memory_space<vmem>>, vector<1x8x1xf32>
    tpu.vector_store %arg6[%c0_14, %c0_15, %c0_16], %16 {strides = array<i32>} : memref<1x8x1xf32, #tpu.memory_space<vmem>>, vector<1x8x1xf32>,
    %c0_17 = arith.constant 0 : index
    %c0_18 = arith.constant 0 : index
    %c0_19 = arith.constant 0 : index
    %18 = vector.load %arg7[%c0_17, %c0_18, %c0_19] : memref<1x8x1xf32, #tpu.memory_space<vmem>>, vector<1x8x1xf32>
    %cst_20 = arith.constant dense<0.000000e+00> : vector<8xf32>
    %19 = vector.multi_reduction <add>, %4, %cst_20 [1] : vector<8x128xf32> to vector<8xf32>
    %20 = vector.shape_cast %19 : vector<8xf32> to vector<8x1xf32>
    %21 = vector.shape_cast %20 : vector<8x1xf32> to vector<1x8x1xf32>
    %22 = arith.addf %18, %21 : vector<1x8x1xf32>
    %c0_21 = arith.constant 0 : index
    %c0_22 = arith.constant 0 : index
    %c0_23 = arith.constant 0 : index
    %23 = vector.load %arg7[%c0_21, %c0_22, %c0_23] : memref<1x8x1xf32, #tpu.memory_space<vmem>>, vector<1x8x1xf32>
    tpu.vector_store %arg7[%c0_21, %c0_22, %c0_23], %22 {strides = array<i32>} : memref<1x8x1xf32, #tpu.memory_space<vmem>>, vector<1x8x1xf32>,
    return
  }
  func.func @transform_0(%arg0: i32, %arg1: i32, %arg2: i32) -> (i32, i32) {
    %c1_i32 = arith.constant 1 : i32
    %0 = arith.muli %arg0, %c1_i32 : i32
    %1 = arith.addi %0, %arg2 : i32
    %c1_i32_0 = arith.constant 1 : i32
    %2 = arith.minsi %1, %c1_i32_0 : i32
    %c0_i32 = arith.constant 0 : i32
    return %arg1, %2 : i32, i32
  }
  func.func @transform_1(%arg0: i32, %arg1: i32, %arg2: i32) -> (i32, i32) {
    %c1_i32 = arith.constant 1 : i32
    %0 = arith.muli %arg0, %c1_i32 : i32
    %1 = arith.addi %0, %arg2 : i32
    %c1_i32_0 = arith.constant 1 : i32
    %2 = arith.minsi %1, %c1_i32_0 : i32
    %c0_i32 = arith.constant 0 : i32
    return %arg1, %2 : i32, i32
  }
  func.func @transform_2(%arg0: i32, %arg1: i32, %arg2: i32) -> (i32, i32, i32) {
    %c0_i32 = arith.constant 0 : i32
    %c0_i32_0 = arith.constant 0 : i32
    return %arg0, %arg1, %c0_i32 : i32, i32, i32
  }
  func.func @transform_3(%arg0: i32, %arg1: i32, %arg2: i32) -> (i32, i32, i32) {
    %c0_i32 = arith.constant 0 : i32
    %c0_i32_0 = arith.constant 0 : i32
    return %arg0, %arg1, %c0_i32 : i32, i32, i32
  }
  func.func @transform_4(%arg0: i32, %arg1: i32, %arg2: i32) -> (i32, i32, i32) {
    %c0_i32 = arith.constant 0 : i32
    %c0_i32_0 = arith.constant 0 : i32
    return %arg0, %arg1, %c0_i32 : i32, i32, i32
  }
}

</mosaic_0001>

<llo_original>
// kernel: tpu_custom_call.1
$region0: #{tpu_custom_call.1}
  #allocation0 [shape = 'u32[]', space=smem, size = 0x4, offset = 0x4, fixed_abs, tag = 'smem constant byte address 0x4 - core index']
  #allocation1 [shape = 'u32[144,128]{1,0:T(1,128)}', space=vmem, size = 0x12000, scoped, tag = 'internal scratch']
  %s0 = inlined_call_operand.hbm [shape: f32[8,256], index: 0, kind: input, shape index: {}]
  %s1 = inlined_call_operand.hbm [shape: f32[8,256], index: 1, kind: input, shape index: {}]
  %s2 = inlined_call_operand.vmem [shape: f32[2,8,1], index: 2, kind: output, shape index: {0}]
  %s3 = inlined_call_operand.vmem [shape: f32[2,8,1], index: 3, kind: output, shape index: {1}]
  %s4 = inlined_call_operand.vmem [shape: f32[2,8,1], index: 4, kind: output, shape index: {2}]
  %5 = xla_tuple %s2, %s3, %s4
  %s6 = sld [smem:[#allocation0]]
  $region69: #{tpu_custom_call.1} parent=0
    _
  %s8 = ssub.s32 1, %s6
  %s9 = scalar_select 0, %s8, %s6
  $region1: #{tpu_custom_call.1} parent=0
    #allocation2 [shape = 'u8[8192]{0}', space=vmem, size = 0x2000, scoped, tag = 'input window, operand 0']
    #allocation3 [shape = 's32[2]{0}', space=sflag, size = 0x8, scoped, tag = 'scoped memory for tpu_custom_call.1']
    #allocation4 [shape = 'u8[8192]{0}', space=vmem, size = 0x2000, scoped, tag = 'input window, operand 1']
    #allocation5 [shape = 's32[2]{0}', space=sflag, size = 0x8, scoped, tag = 'scoped memory for tpu_custom_call.1']
    %10 = vsyncpa [#allocation3], 0
    %s11 = scalar_lea.sflag [#allocation3], 1
    %12 = vsyncpa %s11, 0
    %13 = vsyncpa [#allocation5], 0
    %s14 = scalar_lea.sflag [#allocation5], 1
    %15 = vsyncpa %s14, 0
    loop: start=0, step=1, limit=4
    $region2: #{tpu_custom_call.1} parent=1 // loop_pre_header
      _
    $region3: #{tpu_custom_call.1} parent=1 // loop_header
      %s17 = sphi 0, %s21
      %p18 = scmp.ge.s32.totalorder %s17, 4
      %s24 = sphi 0, %s43
      %s25 = sphi 0, %s39
      %s26 = sphi 0, %s35
      %s27 = sphi 0, %s24
      %s28 = sphi 0, %s25
      %s29 = sphi 0, %s26
      %s30 = sphi 0, %s27
      %s31 = sphi 0, %s28
      %s32 = sphi 0, %s29
      %s54 = sphi 0, %s56
      %s57 = sphi 0, %s54
      %s58 = sphi 0, %s57
      %s74 = sphi 0, %s58
      %s88 = sphi 0, %s90
      %s91 = sphi 0, %s88
      %s92 = sphi 0, %s91
      %s108 = sphi 0, %s92
      %s116 = sphi 0, %s118
      %s119 = sphi 0, %s116
      %s120 = sphi 0, %s119
      %s136 = sphi 0, %s120
      %s144 = sphi 0, %s146
      %s147 = sphi 0, %s144
      %s148 = sphi 0, %s147
      %s164 = sphi 0, %s148
      %s172 = sphi 0, %s174
      %s175 = sphi 0, %s172
      %s176 = sphi 0, %s175
      %s192 = sphi 0, %s176
    $region4: #{tpu_custom_call.1} parent=1 // loop_header_branch
      %20 = sbr.rel (%p18) target = $region8
    $region5: #{tpu_custom_call.1} parent=1 // loop_body
      %s22 = ssub.s32 %s17, 1
      %s23 = ssub.s32 %s17, 2
      %s33 = sadd.s32 1, %s26
      %p34 = scmp.ge.s32.totalorder %s33, 1
      %s35 = scalar_select %p34, 0, %s33
      %s36 = sadd.s32 1, %s25
      %s37 = scalar_select %p34, %s36, %s25
      %p38 = scmp.ge.s32.totalorder %s37, 1
      %s39 = scalar_select %p38, 0, %s37
      %s40 = sadd.s32 1, %s24
      %s41 = scalar_select %p38, %s40, %s24
      %p42 = scmp.ge.s32.totalorder %s41, 2
      %s43 = scalar_select %p42, 0, %s41
      %s44 = sadd.s32 %s24, %s26
      %p45 = scmp.lt.s32.totalorder %s44, 1
      %s46 = scalar_select %p45, %s44, 1
      %s47 = sadd.s32 %s43, %s35
      %p48 = scmp.lt.s32.totalorder %s47, 1
      %s49 = scalar_select %p48, %s47, 1
      %s50 = ssub.s32 %s25, %s39
      %s51 = ssub.s32 %s46, %s49
      %s52 = sor.u32 %s50, %s51
      %p53 = scmp.eq.s32.totalorder %s52, 0
      %s55 = sadd.s32 %s54, 1
      %s56 = scalar_select %p53, %s54, %s55
      %p59 = pneg %p53
      %p60 = scmp.eq.s32.totalorder %s17, 1
      %p61 = por %p59, %p60
      %p62 = scmp.ne.s32.totalorder %s54, %s57
      %p63 = scmp.eq.s32.totalorder %s17, 0
      %p64 = por %p62, %p63
      %p65 = scmp.ne.s32.totalorder %s54, %s57
      %p66 = scmp.eq.s32.totalorder %s22, 1
      %p67 = por %p65, %p66
      %p68 = scmp.ne.s32.totalorder %s57, %s58
      %p69 = scmp.eq.s32.totalorder %s22, 0
      %p70 = por %p68, %p69
      %p71 = scmp.ne.s32.totalorder %s57, %s58
      %p72 = scmp.eq.s32.totalorder %s23, 1
      %p73 = por %p71, %p72
      %p75 = scmp.ne.s32.totalorder %s58, %s74
      %p76 = scmp.eq.s32.totalorder %s23, 0
      %p77 = por %p75, %p76
      %s78 = sadd.s32 %s24, %s26
      %p79 = scmp.lt.s32.totalorder %s78, 1
      %s80 = scalar_select %p79, %s78, 1
      %s81 = sadd.s32 %s43, %s35
      %p82 = scmp.lt.s32.totalorder %s81, 1
      %s83 = scalar_select %p82, %s81, 1
      %s84 = ssub.s32 %s25, %s39
      %s85 = ssub.s32 %s80, %s83
      %s86 = sor.u32 %s84, %s85
      %p87 = scmp.eq.s32.totalorder %s86, 0
      %s89 = sadd.s32 %s88, 1
      %s90 = scalar_select %p87, %s88, %s89
      %p93 = pneg %p87
      %p94 = scmp.eq.s32.totalorder %s17, 1
      %p95 = por %p93, %p94
      %p96 = scmp.ne.s32.totalorder %s88, %s91
      %p97 = scmp.eq.s32.totalorder %s17, 0
      %p98 = por %p96, %p97
      %p99 = scmp.ne.s32.totalorder %s88, %s91
      %p100 = scmp.eq.s32.totalorder %s22, 1
      %p101 = por %p99, %p100
      %p102 = scmp.ne.s32.totalorder %s91, %s92
      %p103 = scmp.eq.s32.totalorder %s22, 0
      %p104 = por %p102, %p103
      %p105 = scmp.ne.s32.totalorder %s91, %s92
      %p106 = scmp.eq.s32.totalorder %s23, 1
      %p107 = por %p105, %p106
      %p109 = scmp.ne.s32.totalorder %s92, %s108
      %p110 = scmp.eq.s32.totalorder %s23, 0
      %p111 = por %p109, %p110
      %s112 = ssub.s32 %s24, %s43
      %s113 = ssub.s32 %s25, %s39
      %s114 = sor.u32 %s112, %s113
      %p115 = scmp.eq.s32.totalorder %s114, 0
      %s117 = sadd.s32 %s116, 1
      %s118 = scalar_select %p115, %s116, %s117
      %p121 = pneg %p115
      %p122 = scmp.eq.s32.totalorder %s17, 1
      %p123 = por %p121, %p122
      %p124 = scmp.ne.s32.totalorder %s116, %s119
      %p125 = scmp.eq.s32.totalorder %s17, 0
      %p126 = por %p124, %p125
      %p127 = scmp.ne.s32.totalorder %s116, %s119
      %p128 = scmp.eq.s32.totalorder %s22, 1
      %p129 = por %p127, %p128
      %p130 = scmp.ne.s32.totalorder %s119, %s120
      %p131 = scmp.eq.s32.totalorder %s22, 0
      %p132 = por %p130, %p131
      %p133 = scmp.ne.s32.totalorder %s119, %s120
      %p134 = scmp.eq.s32.totalorder %s23, 1
      %p135 = por %p133, %p134
      %p137 = scmp.ne.s32.totalorder %s120, %s136
      %p138 = scmp.eq.s32.totalorder %s23, 0
      %p139 = por %p137, %p138
      %s140 = ssub.s32 %s24, %s43
      %s141 = ssub.s32 %s25, %s39
      %s142 = sor.u32 %s140, %s141
      %p143 = scmp.eq.s32.totalorder %s142, 0
      %s145 = sadd.s32 %s144, 1
      %s146 = scalar_select %p143, %s144, %s145
      %p149 = pneg %p143
      %p150 = scmp.eq.s32.totalorder %s17, 1
      %p151 = por %p149, %p150
      %p152 = scmp.ne.s32.totalorder %s144, %s147
      %p153 = scmp.eq.s32.totalorder %s17, 0
      %p154 = por %p152, %p153
      %p155 = scmp.ne.s32.totalorder %s144, %s147
      %p156 = scmp.eq.s32.totalorder %s22, 1
      %p157 = por %p155, %p156
      %p158 = scmp.ne.s32.totalorder %s147, %s148
      %p159 = scmp.eq.s32.totalorder %s22, 0
      %p160 = por %p158, %p159
      %p161 = scmp.ne.s32.totalorder %s147, %s148
      %p162 = scmp.eq.s32.totalorder %s23, 1
      %p163 = por %p161, %p162
      %p165 = scmp.ne.s32.totalorder %s148, %s164
      %p166 = scmp.eq.s32.totalorder %s23, 0
      %p167 = por %p165, %p166
      %s168 = ssub.s32 %s24, %s43
      %s169 = ssub.s32 %s25, %s39
      %s170 = sor.u32 %s168, %s169
      %p171 = scmp.eq.s32.totalorder %s170, 0
      %s173 = sadd.s32 %s172, 1
      %s174 = scalar_select %p171, %s172, %s173
      %p177 = pneg %p171
      %p178 = scmp.eq.s32.totalorder %s17, 1
      %p179 = por %p177, %p178
      %p180 = scmp.ne.s32.totalorder %s172, %s175
      %p181 = scmp.eq.s32.totalorder %s17, 0
      %p182 = por %p180, %p181
      %p183 = scmp.ne.s32.totalorder %s172, %s175
      %p184 = scmp.eq.s32.totalorder %s22, 1
      %p185 = por %p183, %p184
      %p186 = scmp.ne.s32.totalorder %s175, %s176
      %p187 = scmp.eq.s32.totalorder %s22, 0
      %p188 = por %p186, %p187
      %p189 = scmp.ne.s32.totalorder %s175, %s176
      %p190 = scmp.eq.s32.totalorder %s23, 1
      %p191 = por %p189, %p190
      %p193 = scmp.ne.s32.totalorder %s176, %s192
      %p194 = scmp.eq.s32.totalorder %s23, 0
      %p195 = por %p193, %p194
      %p196 = scmp.le.s32.totalorder 1, %s17
      %p197 = scmp.lt.s32.totalorder %s17, 3
      %p198 = pnand %p196, %p197
      %p199 = pneg %p198
      // Predicated region
      $region9: #{tpu_custom_call.1} parent=5 // pred_check
        _
      $region10: #{tpu_custom_call.1} parent=5 // pred_check_branch
        %201 = sbr.rel (%p198) target = $region12
      $region11: #{tpu_custom_call.1} parent=5 // pred_region
        %s202 = ssub.s32 %s17, 1
      $region12: #{tpu_custom_call.1} parent=5 // pred_fallthru
        _
      %p203 = scmp.lt.s32.totalorder %s17, 2
      // Predicated region
      $region13: #{tpu_custom_call.1} parent=5 // pred_check
        %p204 = pneg %p203
      $region14: #{tpu_custom_call.1} parent=5 // pred_check_branch
        %206 = sbr.rel (%p204) target = $region16
      $region15: #{tpu_custom_call.1} parent=5 // pred_region
        // Predicated region
        $region17: #{tpu_custom_call.1} parent=15 // pred_check
          %p207 = pneg %p64
        $region18: #{tpu_custom_call.1} parent=15 // pred_check_branch
          %209 = sbr.rel (%p207) target = $region20
        $region19: #{tpu_custom_call.1} parent=15 // pred_region
          %s210 = sand.u32 %s54, 1
          %s211 = scalar_lea.sflag [#allocation3], %s210
          %s212 = sand.u32 %s54, 1
          %s213 = smul.addr %s212, 8
          %s214 = scalar_lea.vmem [#allocation2], %s213
          %s215 = sadd.s32 %s24, %s26
          %p216 = scmp.lt.s32.totalorder %s215, 1
          %s217 = scalar_select %p216, %s215, 1
          %s219 = ssub.s32 128, 128
          %220 = vsyncadd %s211, %s219
          %s221 = smul.addr %s25, 2
          %s222 = sadd.s32 %s217, %s221
          %s223 = smul.addr %s222, 128
          %s224 = scalar_lea.hbm %s0, %s223
          %s226 = sshll.u32 %s214, 4
          %s227 = int_to_ptr.vmem [resolvable:$true] %s226
          %229 = dma.hbm_to_vmem [thread:$0]  %s224, 128, %s227, %s211
        $region20: #{tpu_custom_call.1} parent=15 // pred_fallthru
          _
        // Predicated region
        $region21: #{tpu_custom_call.1} parent=15 // pred_check
          %p230 = pneg %p98
        $region22: #{tpu_custom_call.1} parent=15 // pred_check_branch
          %232 = sbr.rel (%p230) target = $region24
        $region23: #{tpu_custom_call.1} parent=15 // pred_region
          %s233 = sand.u32 %s88, 1
          %s234 = scalar_lea.sflag [#allocation5], %s233
          %s235 = sand.u32 %s88, 1
          %s236 = smul.addr %s235, 8
          %s237 = scalar_lea.vmem [#allocation4], %s236
          %s238 = sadd.s32 %s24, %s26
          %p239 = scmp.lt.s32.totalorder %s238, 1
          %s240 = scalar_select %p239, %s238, 1
          %s242 = ssub.s32 128, 128
          %243 = vsyncadd %s234, %s242
          %s244 = smul.addr %s25, 2
          %s245 = sadd.s32 %s240, %s244
          %s246 = smul.addr %s245, 128
          %s247 = scalar_lea.hbm %s1, %s246
          %s249 = sshll.u32 %s237, 4
          %s250 = int_to_ptr.vmem [resolvable:$true] %s249
          %252 = dma.hbm_to_vmem [thread:$0]  %s247, 128, %s250, %s234
        $region24: #{tpu_custom_call.1} parent=15 // pred_fallthru
          _
      $region16: #{tpu_custom_call.1} parent=5 // pred_fallthru
        _
      %p253 = scmp.le.s32.totalorder 1, %s17
      %p254 = scmp.lt.s32.totalorder %s17, 3
      %p255 = pnand %p253, %p254
      %p256 = pneg %p255
      // Predicated region
      $region25: #{tpu_custom_call.1} parent=5 // pred_check
        _
      $region26: #{tpu_custom_call.1} parent=5 // pred_check_branch
        %258 = sbr.rel (%p255) target = $region28
      $region27: #{tpu_custom_call.1} parent=5 // pred_region
        %s259 = ssub.s32 %s17, 1
        %s260 = sand.u32 %s57, 1
        %s261 = scalar_lea.sflag [#allocation3], %s260
        %s262 = sand.u32 %s57, 1
        %s263 = smul.addr %s262, 8
        %s264 = scalar_lea.vmem [#allocation2], %s263
        // Predicated region
        $region29: #{tpu_custom_call.1} parent=27 // pred_check
          %p265 = pneg %p70
        $region30: #{tpu_custom_call.1} parent=27 // pred_check_branch
          %267 = sbr.rel (%p265) target = $region32
        $region31: #{tpu_custom_call.1} parent=27 // pred_region
          %268 = dma.done %s261, 128
        $region32: #{tpu_custom_call.1} parent=27 // pred_fallthru
          _
        %s269 = sand.u32 %s91, 1
        %s270 = scalar_lea.sflag [#allocation5], %s269
        %s271 = sand.u32 %s91, 1
        %s272 = smul.addr %s271, 8
        %s273 = scalar_lea.vmem [#allocation4], %s272
        // Predicated region
        $region33: #{tpu_custom_call.1} parent=27 // pred_check
          %p274 = pneg %p104
        $region34: #{tpu_custom_call.1} parent=27 // pred_check_branch
          %276 = sbr.rel (%p274) target = $region36
        $region35: #{tpu_custom_call.1} parent=27 // pred_region
          %277 = dma.done %s270, 128
        $region36: #{tpu_custom_call.1} parent=27 // pred_fallthru
          _
        %s278 = sand.u32 %s57, 1
        %s279 = scalar_lea.sflag [#allocation3], %s278
        %s280 = sand.u32 %s57, 1
        %s281 = smul.addr %s280, 8
        %s282 = scalar_lea.vmem [#allocation2], %s281
        %p283 = pneg %p70
        %p284 = pneg %p67
        %s285 = sand.u32 %s91, 1
        %s286 = scalar_lea.sflag [#allocation5], %s285
        %s287 = sand.u32 %s91, 1
        %s288 = smul.addr %s287, 8
        %s289 = scalar_lea.vmem [#allocation4], %s288
        %p290 = pneg %p104
        %p291 = pneg %p101
        %p292 = pneg %p132
        %p293 = pneg %p129
        %p294 = scmp.lt.s32.totalorder %s27, 1
        %s295 = scalar_select %p294, %s27, 1
        %p296 = scmp.lt.s32.totalorder %s28, 0
        %s297 = scalar_select %p296, %s28, 0
        %s298 = sadd.s32 %s297, %s295
        %s299 = smul.addr %s298, 8
        %s300 = scalar_lea.vmem %s2, %s299
        %p301 = pneg %p160
        %p302 = pneg %p157
        %p303 = scmp.lt.s32.totalorder %s27, 1
        %s304 = scalar_select %p303, %s27, 1
        %p305 = scmp.lt.s32.totalorder %s28, 0
        %s306 = scalar_select %p305, %s28, 0
        %s307 = sadd.s32 %s306, %s304
        %s308 = smul.addr %s307, 8
        %s309 = scalar_lea.vmem %s3, %s308
        %p310 = pneg %p188
        %p311 = pneg %p185
        %p312 = scmp.lt.s32.totalorder %s27, 1
        %s313 = scalar_select %p312, %s27, 1
        %p314 = scmp.lt.s32.totalorder %s28, 0
        %s315 = scalar_select %p314, %s28, 0
        %s316 = sadd.s32 %s315, %s313
        %s317 = smul.addr %s316, 8
        %s318 = scalar_lea.vmem %s4, %s317
        %s319 = sadd.s32 %s27, %s29
        %p320 = scmp.lt.s32.totalorder %s319, 1
        %s321 = scalar_select %p320, %s319, 1
        %s322 = sadd.s32 %s27, %s29
        %p323 = scmp.lt.s32.totalorder %s322, 1
        %s324 = scalar_select %p323, %s322, 1
        %p325 = scmp.lt.s32.totalorder %s27, 1
        %s326 = scalar_select %p325, %s27, 1
        %p327 = scmp.lt.s32.totalorder %s28, 0
        %s328 = scalar_select %p327, %s28, 0
        %s329 = sadd.s32 %s328, %s326
        %s330 = smul.addr %s329, 8
        %s331 = scalar_lea.vmem %s2, %s330
        %p332 = scmp.lt.s32.totalorder %s27, 1
        %s333 = scalar_select %p332, %s27, 1
        %p334 = scmp.lt.s32.totalorder %s28, 0
        %s335 = scalar_select %p334, %s28, 0
        %s336 = sadd.s32 %s335, %s333
        %s337 = smul.addr %s336, 8
        %s338 = scalar_lea.vmem %s3, %s337
        %p339 = scmp.lt.s32.totalorder %s27, 1
        %s340 = scalar_select %p339, %s27, 1
        %p341 = scmp.lt.s32.totalorder %s28, 0
        %s342 = scalar_select %p341, %s28, 0
        %s343 = sadd.s32 %s342, %s340
        %s344 = smul.addr %s343, 8
        %s345 = scalar_lea.vmem %s4, %s344
        %p346 = scmp.eq.s32.totalorder %s29, 0
        // Predicated region
        $region37: #{tpu_custom_call.1} parent=27 // pred_check
          %p347 = pneg %p346
        $region38: #{tpu_custom_call.1} parent=27 // pred_check_branch
          %349 = sbr.rel (%p347) target = $region40
        $region39: #{tpu_custom_call.1} parent=27 // pred_region
          %vm350 = vcmask 7168
          %351 = vst.msk [vmem:[%s331] sm:$0xff] %vm350, 0.0
          %352 = vst.msk [vmem:[%s338] sm:$0xff] %vm350, 0.0
          %353 = vst.msk [vmem:[%s345] sm:$0xff] %vm350, 0.0
        $region40: #{tpu_custom_call.1} parent=27 // pred_fallthru
          _
        %v354 = vld [vmem:[%s264] sm:$0xff]
        %v355 = vld [vmem:[%s273] sm:$0xff]
        %v356 = vld [vmem:[%s331] sm:$0xff]
        %v357 = vmul.f32 %v354, %v355
        %358 = vadd.xlane.f32.xlu0 %v357
        %v359 = vpop.xlane.xlu0 %358
        %v360 = vadd.f32 %v356, %v359
        %vm361 = vcmask 7168
        %362 = vst.msk [vmem:[%s331] sm:$0xff] %vm361, %v360
        %v363 = vld [vmem:[%s338] sm:$0xff]
        %364 = vadd.xlane.f32.xlu0 %v354
        %v365 = vpop.xlane.xlu0 %364
        %v366 = vadd.f32 %v363, %v365
        %367 = vst.msk [vmem:[%s338] sm:$0xff] %vm361, %v366
        %v368 = vld [vmem:[%s345] sm:$0xff]
        %369 = vadd.xlane.f32.xlu0 %v355
        %v370 = vpop.xlane.xlu0 %369
        %v371 = vadd.f32 %v368, %v370
        %372 = vst.msk [vmem:[%s345] sm:$0xff] %vm361, %v371
        %p373 = scmp.lt.s32.totalorder %s27, 1
        %s374 = scalar_select %p373, %s27, 1
        %p375 = scmp.lt.s32.totalorder %s28, 0
        %s376 = scalar_select %p375, %s28, 0
        %s377 = sadd.s32 %s376, %s374
        %s378 = smul.addr %s377, 8
        %s379 = scalar_lea.vmem %s2, %s378
        %p380 = scmp.lt.s32.totalorder %s27, 1
        %s381 = scalar_select %p380, %s27, 1
        %p382 = scmp.lt.s32.totalorder %s28, 0
        %s383 = scalar_select %p382, %s28, 0
        %s384 = sadd.s32 %s383, %s381
        %s385 = smul.addr %s384, 8
        %s386 = scalar_lea.vmem %s3, %s385
        %p387 = scmp.lt.s32.totalorder %s27, 1
        %s388 = scalar_select %p387, %s27, 1
        %p389 = scmp.lt.s32.totalorder %s28, 0
        %s390 = scalar_select %p389, %s28, 0
        %s391 = sadd.s32 %s390, %s388
        %s392 = smul.addr %s391, 8
        %s393 = scalar_lea.vmem %s4, %s392
        // Predicated region
        $region41: #{tpu_custom_call.1} parent=27 // pred_check
          %p394 = pneg %p129
        $region42: #{tpu_custom_call.1} parent=27 // pred_check_branch
          %396 = sbr.rel (%p394) target = $region44
        $region43: #{tpu_custom_call.1} parent=27 // pred_region
          _
        $region44: #{tpu_custom_call.1} parent=27 // pred_fallthru
          _
        // Predicated region
        $region45: #{tpu_custom_call.1} parent=27 // pred_check
          %p397 = pneg %p157
        $region46: #{tpu_custom_call.1} parent=27 // pred_check_branch
          %399 = sbr.rel (%p397) target = $region48
        $region47: #{tpu_custom_call.1} parent=27 // pred_region
          _
        $region48: #{tpu_custom_call.1} parent=27 // pred_fallthru
          _
        // Predicated region
        $region49: #{tpu_custom_call.1} parent=27 // pred_check
          %p400 = pneg %p185
        $region50: #{tpu_custom_call.1} parent=27 // pred_check_branch
          %402 = sbr.rel (%p400) target = $region52
        $region51: #{tpu_custom_call.1} parent=27 // pred_region
          _
        $region52: #{tpu_custom_call.1} parent=27 // pred_fallthru
          _
      $region28: #{tpu_custom_call.1} parent=5 // pred_fallthru
        _
      %p403 = scmp.le.s32.totalorder 2, %s17
      // Predicated region
      $region53: #{tpu_custom_call.1} parent=5 // pred_check
        %p404 = pneg %p403
      $region54: #{tpu_custom_call.1} parent=5 // pred_check_branch
        %406 = sbr.rel (%p404) target = $region56
      $region55: #{tpu_custom_call.1} parent=5 // pred_region
        %s407 = ssub.s32 %s17, 2
        // Predicated region
        $region57: #{tpu_custom_call.1} parent=55 // pred_check
          %p408 = pneg %p135
        $region58: #{tpu_custom_call.1} parent=55 // pred_check_branch
          %410 = sbr.rel (%p408) target = $region60
        $region59: #{tpu_custom_call.1} parent=55 // pred_region
          %p411 = scmp.lt.s32.totalorder %s30, 1
          %s412 = scalar_select %p411, %s30, 1
          %p413 = scmp.lt.s32.totalorder %s31, 0
          %s414 = scalar_select %p413, %s31, 0
          %s415 = sadd.s32 %s414, %s412
          %s416 = smul.addr %s415, 8
          %s417 = scalar_lea.vmem %s2, %s416
        $region60: #{tpu_custom_call.1} parent=55 // pred_fallthru
          _
        // Predicated region
        $region61: #{tpu_custom_call.1} parent=55 // pred_check
          %p418 = pneg %p163
        $region62: #{tpu_custom_call.1} parent=55 // pred_check_branch
          %420 = sbr.rel (%p418) target = $region64
        $region63: #{tpu_custom_call.1} parent=55 // pred_region
          %p421 = scmp.lt.s32.totalorder %s30, 1
          %s422 = scalar_select %p421, %s30, 1
          %p423 = scmp.lt.s32.totalorder %s31, 0
          %s424 = scalar_select %p423, %s31, 0
          %s425 = sadd.s32 %s424, %s422
          %s426 = smul.addr %s425, 8
          %s427 = scalar_lea.vmem %s3, %s426
        $region64: #{tpu_custom_call.1} parent=55 // pred_fallthru
          _
        // Predicated region
        $region65: #{tpu_custom_call.1} parent=55 // pred_check
          %p428 = pneg %p191
        $region66: #{tpu_custom_call.1} parent=55 // pred_check_branch
          %430 = sbr.rel (%p428) target = $region68
        $region67: #{tpu_custom_call.1} parent=55 // pred_region
          %p431 = scmp.lt.s32.totalorder %s30, 1
          %s432 = scalar_select %p431, %s30, 1
          %p433 = scmp.lt.s32.totalorder %s31, 0
          %s434 = scalar_select %p433, %s31, 0
          %s435 = sadd.s32 %s434, %s432
          %s436 = smul.addr %s435, 8
          %s437 = scalar_lea.vmem %s4, %s436
        $region68: #{tpu_custom_call.1} parent=55 // pred_fallthru
          _
      $region56: #{tpu_custom_call.1} parent=5 // pred_fallthru
        _
    $region6: #{tpu_custom_call.1} parent=1 // loop_footer
      %s21 = sadd.s32 1, %s17
    $region7: #{tpu_custom_call.1} parent=1 // loop_footer_branch
      %16 = sbr.rel target = $region3
    $region8: #{tpu_custom_call.1} parent=1 // loop_exit
      _
    %438 = vsyncpa [#allocation3], 1
    %s439 = scalar_lea.sflag [#allocation3], 1
    %440 = vsyncpa %s439, 1
    %441 = vsyncpa [#allocation5], 1
    %s442 = scalar_lea.sflag [#allocation5], 1
    %443 = vsyncpa %s442, 1

</llo_original>
